<compile_context>
chip_gen: v7x
topology: tpu7x:2x2x1
jax: 0.10.0
libtpu: 0.0.40
codegen_flags: <defaults>
</compile_context>

<pallas_src>
import functools

import jax
import jax.numpy as jnp
from jax.experimental import pallas as pl
from jax.experimental.pallas import tpu as pltpu


def _cdiv(a, b):
    return (a + b - 1) // b


def _dice_partial_kernel(pred_ref, tgt_ref, num_ref, den_ref, *,
                         num_classes, p_pow, needs_mask):
    """One (partition, L-tile) grid step: accumulate per-(N, C) dice partial sums."""
    l_step = pl.program_id(1)

    @pl.when(l_step == 0)
    def _():
        num_ref[...] = jnp.zeros_like(num_ref)
        den_ref[...] = jnp.zeros_like(den_ref)

    # Upcast in-kernel (inputs DMA'd in native dtype: bf16/f32 logits, int8 ids).
    logits = pred_ref[...].astype(jnp.float32)                    # [N, C, Lt]
    t_idx = tgt_ref[...].astype(jnp.int32)                        # [N, Lt]

    # Numerically-stable softmax over the class axis (dim=1 in the PyTorch module).
    # Divide -> reciprocal (EUP slot) + broadcast multiply (VPU).
    m = jnp.max(logits, axis=1, keepdims=True)                    # [N, 1, Lt]
    e = jnp.exp(logits - m)                                       # [N, C, Lt]
    inv = pl.reciprocal(jnp.sum(e, axis=1, keepdims=True), approx=False)
    if needs_mask:
        # Padded pixels carry target = -1.  Folding the mask into the per-pixel
        # normalizer (only 1/C of the elements) zeroes their probs exactly, so
        # probs^p and probs*onehot both vanish without a per-class-element mul.
        inv = inv * (t_idx >= 0).astype(jnp.float32)[:, None, :]  # [N, 1, Lt]
    probs = e * inv                                               # [N, C, Lt]

    # Implicit one-hot: compare class ids against an iota over the class axis.
    cls = jax.lax.broadcasted_iota(jnp.int32, (1, num_classes, 1), 1)
    onehot = (t_idx[:, None, :] == cls).astype(jnp.float32)       # [N, C, Lt]

    if p_pow == 2:
        pp = probs * probs
    else:
        pp = probs ** p_pow

    # Numerator partial: sum_L probs * onehot.
    # Denominator partial: sum_L probs^p + onehot  (onehot^p == onehot for 0/1).
    num_part = jnp.sum(probs * onehot, axis=2)                    # [N, C]
    den_part = jnp.sum(pp + onehot, axis=2)                       # [N, C]

    num_ref[...] += num_part[None]
    den_ref[...] += den_part[None]


def dice_loss(predict, target, *, num_classes=9, smooth=1.0, p_pow=2,
              weight=None, ignore_index=None,
              lane_tile=4096, num_partitions=2):
    """predict: [N, C, H, W] logits (C == num_classes, any float dtype);
    target: [N, H, W] integer class ids in [0, num_classes)."""
    N, C, H, W = predict.shape
    assert C == num_classes, "predict & target shape do not match"
    L = H * W

    # Native-dtype DMA (no f32 upcast in the wrapper); class ids < 9 fit in int8
    # (4x fewer target bytes).  -1 marks padded pixels.
    pred = predict.reshape(N, C, L)
    tgt = target.reshape(N, L).astype(jnp.int8)

    lane_tile = max(128, (lane_tile // 128) * 128)
    P = max(1, min(num_partitions, L // 128))

    # Prefer a lane tile that exactly divides L // P -> no jnp.pad HBM copy.
    if L % P == 0 and (L // P) % 128 == 0:
        chunk = L // P
        Lt = 128
        for cand in range(min(lane_tile, chunk), 127, -128):
            if chunk % cand == 0:
                Lt = cand
                break
    else:
        Lt = min(lane_tile, 128 * _cdiv(_cdiv(L, P), 128))

    n_tiles = _cdiv(L, P * Lt)
    L_pad = P * n_tiles * Lt
    needs_mask = L_pad != L
    if needs_mask:
        pred = jnp.pad(pred, ((0, 0), (0, 0), (0, L_pad - L)))
        tgt = jnp.pad(tgt, ((0, 0), (0, L_pad - L)), constant_values=-1)

    kernel = functools.partial(_dice_partial_kernel, num_classes=C,
                               p_pow=p_pow, needs_mask=needs_mask)
    num_p, den_p = pl.pallas_call(
        kernel,
        out_shape=(jax.ShapeDtypeStruct((P, N, C), jnp.float32),
                   jax.ShapeDtypeStruct((P, N, C), jnp.float32)),
        grid=(P, n_tiles),
        in_specs=[
            pl.BlockSpec((N, C, Lt), lambda p, l: (0, 0, p * n_tiles + l)),
            pl.BlockSpec((N, Lt), lambda p, l: (0, p * n_tiles + l)),
        ],
        out_specs=(
            pl.BlockSpec((1, N, C), lambda p, l: (p, 0, 0)),
            pl.BlockSpec((1, N, C), lambda p, l: (p, 0, 0)),
        ),
        compiler_params=pltpu.CompilerParams(
            dimension_semantics=("parallel", "arbitrary")),
    )(pred, tgt)

    # Tiny finalize on the host/XLA side (outside the kernel): combine partition
    # partials, apply smooth / p / reduction='mean', sum classes / num_classes.
    num = jnp.sum(num_p, axis=0) + smooth                  # [N, C]
    den = jnp.sum(den_p, axis=0) + smooth                  # [N, C]
    loss_nc = 1.0 - num / den                              # [N, C]
    per_class = jnp.mean(loss_nc, axis=0)                  # reduction='mean' over batch
    if weight is not None:
        per_class = per_class * weight
    if ignore_index is not None:
        per_class = jnp.where(jnp.arange(C) != ignore_index, per_class, 0.0)
    return jnp.sum(per_class) / num_classes


def _dice_loss_ref(predict, target, *, num_classes=9, smooth=1.0, p_pow=2):
    """Pure-JAX reference mirroring the PyTorch DiceLoss module."""
    N, C, H, W = predict.shape
    probs = jax.nn.softmax(predict.astype(jnp.float32), axis=1)
    onehot = jax.nn.one_hot(target, num_classes, axis=1, dtype=jnp.float32)
    p = probs.reshape(N, C, -1)
    t = onehot.reshape(N, C, -1)
    num = jnp.sum(p * t, axis=2) + smooth
    den = jnp.sum(p ** p_pow + t ** p_pow, axis=2) + smooth
    loss = jnp.mean(1.0 - num / den, axis=0)
    return jnp.sum(loss) / num_classes


if __name__ == "__main__":
    # DiceLoss has no learnable parameters (weight=None, ignore_index=None).
    key = jax.random.PRNGKey(0)
    k1, k2, k3, k4 = jax.random.split(key, 4)

    # Case 1: f32 logits, L divisible by the tiling (no padding path, no mask ops).
    N, C, H, W = 2, 9, 16, 16  # num_classes fixed to 9 by _convert_target
    predict = jax.random.normal(k1, (N, C, H, W), dtype=jnp.float32)
    target = jax.random.randint(k2, (N, H, W), 0, C, dtype=jnp.int32)
    out = jax.block_until_ready(dice_loss(predict, target))
    ref = _dice_loss_ref(predict, target)
    assert jnp.allclose(out, ref, atol=1e-5, rtol=1e-5), (out, ref)

    # Case 2: bf16 logits DMA'd natively, upcast inside the kernel.
    predict_bf16 = predict.astype(jnp.bfloat16)
    out_bf16 = jax.block_until_ready(dice_loss(predict_bf16, target))
    ref_bf16 = _dice_loss_ref(predict_bf16, target)
    assert jnp.allclose(out_bf16, ref_bf16, atol=1e-4, rtol=1e-4), (out_bf16, ref_bf16)

    # Case 3: L not divisible by the tiling -> exercises the padding / mask path.
    H2 = W2 = 20
    predict2 = jax.random.normal(k3, (N, C, H2, W2), dtype=jnp.float32)
    target2 = jax.random.randint(k4, (N, H2, W2), 0, C, dtype=jnp.int32)
    out2 = jax.block_until_ready(dice_loss(predict2, target2))
    ref2 = _dice_loss_ref(predict2, target2)
    assert jnp.allclose(out2, ref2, atol=1e-5, rtol=1e-5), (out2, ref2)

    print("KERNEL_OK")
</pallas_src>

<mosaic_0001>
module attributes {stable_mosaic.version = 11 : i64} {
  func.func @_dice_partial_kernel(%arg0: i32, %arg1: i32, %arg2: memref<2x9x128xf32, #tpu.memory_space<vmem>>, %arg3: memref<2x128xi8, #tpu.memory_space<vmem>>, %arg4: memref<1x2x9xf32, #tpu.memory_space<vmem>>, %arg5: memref<1x2x9xf32, #tpu.memory_space<vmem>>) attributes {dimension_semantics = [#tpu.dimension_semantics<parallel>, #tpu.dimension_semantics<arbitrary>], iteration_bounds = array<i64: 2, 1>, scalar_prefetch = 0 : i64, scratch_operands = 0 : i64, tpu.core_type = #tpu.core_type<tc>, window_params = [{transform_indices = @transform_0, window_bounds = array<i64: 2, 9, 128>}, {transform_indices = @transform_1, window_bounds = array<i64: 2, 128>}, {transform_indices = @transform_2, window_bounds = array<i64: 1, 2, 9>}, {transform_indices = @transform_3, window_bounds = array<i64: 1, 2, 9>}]} {
    %c0_i32 = arith.constant 0 : i32
    %0 = arith.cmpi eq, %arg1, %c0_i32 : i32
    %1 = arith.extui %0 : i1 to i32
    %c0_i32_0 = arith.constant 0 : i32
    %2 = arith.cmpi ne, %1, %c0_i32_0 : i32
    scf.if %2 {
      %cst_20 = arith.constant 0.000000e+00 : f32
      %36 = vector.broadcast %cst_20 : f32 to vector<1x2x9xf32>
      %c0_21 = arith.constant 0 : index
      %c0_22 = arith.constant 0 : index
      %c0_23 = arith.constant 0 : index
      %37 = vector.load %arg4[%c0_21, %c0_22, %c0_23] : memref<1x2x9xf32, #tpu.memory_space<vmem>>, vector<1x2x9xf32>
      tpu.vector_store %arg4[%c0_21, %c0_22, %c0_23], %36 {strides = array<i32>} : memref<1x2x9xf32, #tpu.memory_space<vmem>>, vector<1x2x9xf32>,
      %cst_24 = arith.constant 0.000000e+00 : f32
      %38 = vector.broadcast %cst_24 : f32 to vector<1x2x9xf32>
      %c0_25 = arith.constant 0 : index
      %c0_26 = arith.constant 0 : index
      %c0_27 = arith.constant 0 : index
      %39 = vector.load %arg5[%c0_25, %c0_26, %c0_27] : memref<1x2x9xf32, #tpu.memory_space<vmem>>, vector<1x2x9xf32>
      tpu.vector_store %arg5[%c0_25, %c0_26, %c0_27], %38 {strides = array<i32>} : memref<1x2x9xf32, #tpu.memory_space<vmem>>, vector<1x2x9xf32>,
    } else {
    }
    %c0 = arith.constant 0 : index
    %c0_1 = arith.constant 0 : index
    %c0_2 = arith.constant 0 : index
    %3 = vector.load %arg2[%c0, %c0_1, %c0_2] : memref<2x9x128xf32, #tpu.memory_space<vmem>>, vector<2x9x128xf32>
    %c0_3 = arith.constant 0 : index
    %c0_4 = arith.constant 0 : index
    %4 = vector.load %arg3[%c0_3, %c0_4] : memref<2x128xi8, #tpu.memory_space<vmem>>, vector<2x128xi8>
    %5 = arith.extsi %4 : vector<2x128xi8> to vector<2x128xi32>
    %cst = arith.constant dense<0xFF800000> : vector<2x128xf32>
    %6 = vector.multi_reduction <maximumf>, %3, %cst [1] : vector<2x9x128xf32> to vector<2x128xf32>
    %7 = vector.shape_cast %6 : vector<2x128xf32> to vector<2x1x128xf32>
    %8 = vector.broadcast %7 : vector<2x1x128xf32> to vector<2x9x128xf32>
    %9 = arith.subf %3, %8 : vector<2x9x128xf32>
    %10 = math.exp %9 : vector<2x9x128xf32>
    %cst_5 = arith.constant dense<0.000000e+00> : vector<2x128xf32>
    %11 = vector.multi_reduction <add>, %10, %cst_5 [1] : vector<2x9x128xf32> to vector<2x128xf32>
    %12 = vector.shape_cast %11 : vector<2x128xf32> to vector<2x1x128xf32>
    %13 = tpu.reciprocal %12 : vector<2x1x128xf32> -> vector<2x1x128xf32>
    %14 = vector.broadcast %13 : vector<2x1x128xf32> to vector<2x9x128xf32>
    %15 = arith.mulf %10, %14 : vector<2x9x128xf32>
    %16 = tpu.iota {dimensions = array<i32: 1>} : vector<1x9x1xi32>
    %17 = vector.shape_cast %5 : vector<2x128xi32> to vector<2x1x128xi32>
    %18 = vector.broadcast %17 : vector<2x1x128xi32> to vector<2x9x128xi32>
    %19 = vector.broadcast %16 : vector<1x9x1xi32> to vector<2x9x128xi32>
    %20 = arith.cmpi eq, %18, %19 : vector<2x9x128xi32>
    %21 = arith.extui %20 : vector<2x9x128xi1> to vector<2x9x128xi32>
    %22 = arith.sitofp %21 : vector<2x9x128xi32> to vector<2x9x128xf32>
    %23 = arith.mulf %15, %15 : vector<2x9x128xf32>
    %24 = arith.mulf %15, %22 : vector<2x9x128xf32>
    %cst_6 = arith.constant dense<0.000000e+00> : vector<2x9xf32>
    %25 = vector.multi_reduction <add>, %24, %cst_6 [2] : vector<2x9x128xf32> to vector<2x9xf32>
    %26 = arith.addf %23, %22 : vector<2x9x128xf32>
    %cst_7 = arith.constant dense<0.000000e+00> : vector<2x9xf32>
    %27 = vector.multi_reduction <add>, %26, %cst_7 [2] : vector<2x9x128xf32> to vector<2x9xf32>
    %c0_8 = arith.constant 0 : index
    %c0_9 = arith.constant 0 : index
    %c0_10 = arith.constant 0 : index
    %28 = vector.load %arg4[%c0_8, %c0_9, %c0_10] : memref<1x2x9xf32, #tpu.memory_space<vmem>>, vector<1x2x9xf32>
    %29 = vector.shape_cast %25 : vector<2x9xf32> to vector<1x2x9xf32>
    %30 = arith.addf %28, %29 : vector<1x2x9xf32>
    %c0_11 = arith.constant 0 : index
    %c0_12 = arith.constant 0 : index
    %c0_13 = arith.constant 0 : index
    %31 = vector.load %arg4[%c0_11, %c0_12, %c0_13] : memref<1x2x9xf32, #tpu.memory_space<vmem>>, vector<1x2x9xf32>
    tpu.vector_store %arg4[%c0_11, %c0_12, %c0_13], %30 {strides = array<i32>} : memref<1x2x9xf32, #tpu.memory_space<vmem>>, vector<1x2x9xf32>,
    %c0_14 = arith.constant 0 : index
    %c0_15 = arith.constant 0 : index
    %c0_16 = arith.constant 0 : index
    %32 = vector.load %arg5[%c0_14, %c0_15, %c0_16] : memref<1x2x9xf32, #tpu.memory_space<vmem>>, vector<1x2x9xf32>
    %33 = vector.shape_cast %27 : vector<2x9xf32> to vector<1x2x9xf32>
    %34 = arith.addf %32, %33 : vector<1x2x9xf32>
    %c0_17 = arith.constant 0 : index
    %c0_18 = arith.constant 0 : index
    %c0_19 = arith.constant 0 : index
    %35 = vector.load %arg5[%c0_17, %c0_18, %c0_19] : memref<1x2x9xf32, #tpu.memory_space<vmem>>, vector<1x2x9xf32>
    tpu.vector_store %arg5[%c0_17, %c0_18, %c0_19], %34 {strides = array<i32>} : memref<1x2x9xf32, #tpu.memory_space<vmem>>, vector<1x2x9xf32>,
    return
  }
  func.func @transform_0(%arg0: i32, %arg1: i32) -> (i32, i32, i32) {
    %c1_i32 = arith.constant 1 : i32
    %0 = arith.muli %arg0, %c1_i32 : i32
    %1 = arith.addi %0, %arg1 : i32
    %c0_i32 = arith.constant 0 : i32
    %c0_i32_0 = arith.constant 0 : i32
    %c0_i32_1 = arith.constant 0 : i32
    return %c0_i32, %c0_i32_0, %1 : i32, i32, i32
  }
  func.func @transform_1(%arg0: i32, %arg1: i32) -> (i32, i32) {
    %c1_i32 = arith.constant 1 : i32
    %0 = arith.muli %arg0, %c1_i32 : i32
    %1 = arith.addi %0, %arg1 : i32
    %c0_i32 = arith.constant 0 : i32
    %c0_i32_0 = arith.constant 0 : i32
    return %c0_i32, %1 : i32, i32
  }
  func.func @transform_2(%arg0: i32, %arg1: i32) -> (i32, i32, i32) {
    %c0_i32 = arith.constant 0 : i32
    %c0_i32_0 = arith.constant 0 : i32
    %c0_i32_1 = arith.constant 0 : i32
    return %arg0, %c0_i32, %c0_i32_0 : i32, i32, i32
  }
  func.func @transform_3(%arg0: i32, %arg1: i32) -> (i32, i32, i32) {
    %c0_i32 = arith.constant 0 : i32
    %c0_i32_0 = arith.constant 0 : i32
    %c0_i32_1 = arith.constant 0 : i32
    return %arg0, %c0_i32, %c0_i32_0 : i32, i32, i32
  }
}

</mosaic_0001>

<llo_original>
// kernel: tpu_custom_call.1
$region0: #{tpu_custom_call.1}
  #allocation0 [shape = 'u32[]', space=smem, size = 0x4, offset = 0x4, fixed_abs, tag = 'smem constant byte address 0x4 - core index']
  #allocation1 [shape = 'u32[144,128]{1,0:T(1,128)}', space=vmem, size = 0x12000, scoped, tag = 'internal scratch']
  %s0 = inlined_call_operand.vmem [shape: f32[2,9,256], index: 0, kind: input, shape index: {}]
  %s1 = inlined_call_operand.vmem [shape: s8[2,256], index: 1, kind: input, shape index: {}]
  %s2 = inlined_call_operand.hbm [shape: f32[2,2,9], index: 2, kind: output, shape index: {0}]
  %s3 = inlined_call_operand.hbm [shape: f32[2,2,9], index: 3, kind: output, shape index: {1}]
  %4 = xla_tuple %s2, %s3
  %s5 = sld [smem:[#allocation0]]
  $region91: #{tpu_custom_call.1} parent=0
    _
  %s7 = ssub.s32 1, %s5
  %s8 = scalar_select 0, %s7, %s5
  $region1: #{tpu_custom_call.1} parent=0
    #allocation2 [shape = 'u8[32768]{0}', space=vmem, size = 0x8000, scoped, tag = 'input window, operand 0']
    #allocation3 [shape = 'u8[2048]{0}', space=vmem, size = 0x800, scoped, tag = 'output window, operand 0']
    #allocation4 [shape = 's32[2]{0}', space=sflag, size = 0x8, scoped, tag = 'scoped memory for tpu_custom_call.1']
    #allocation5 [shape = 'u8[2048]{0}', space=vmem, size = 0x800, scoped, tag = 'output window, operand 1']
    #allocation6 [shape = 's32[2]{0}', space=sflag, size = 0x8, scoped, tag = 'scoped memory for tpu_custom_call.1']
    %9 = vsyncpa [#allocation4], 0
    %s10 = scalar_lea.sflag [#allocation4], 1
    %11 = vsyncpa %s10, 0
    %12 = vsyncpa [#allocation6], 0
    %s13 = scalar_lea.sflag [#allocation6], 1
    %14 = vsyncpa %s13, 0
    loop: start=0, step=1, limit=4
    $region2: #{tpu_custom_call.1} parent=1 // loop_pre_header
      _
    $region3: #{tpu_custom_call.1} parent=1 // loop_header
      %s16 = sphi 0, %s20
      %p17 = scmp.ge.s32.totalorder %s16, 4
      %s23 = sphi 0, %s35
      %s24 = sphi 0, %s31
      %s25 = sphi 0, %s23
      %s26 = sphi 0, %s24
      %s27 = sphi 0, %s25
      %s28 = sphi 0, %s26
      %s40 = sphi 0, %s42
      %s43 = sphi 0, %s40
      %s44 = sphi 0, %s43
      %s60 = sphi 0, %s44
      %s68 = sphi 0, %s70
      %s71 = sphi 0, %s68
      %s72 = sphi 0, %s71
      %s88 = sphi 0, %s72
      %s94 = sphi 0, %s96
      %s97 = sphi 0, %s94
      %s98 = sphi 0, %s97
      %s114 = sphi 0, %s98
      %s120 = sphi 0, %s122
      %s123 = sphi 0, %s120
      %s124 = sphi 0, %s123
      %s140 = sphi 0, %s124
    $region4: #{tpu_custom_call.1} parent=1 // loop_header_branch
      %19 = sbr.rel (%p17) target = $region8
    $region5: #{tpu_custom_call.1} parent=1 // loop_body
      %s21 = ssub.s32 %s16, 1
      %s22 = ssub.s32 %s16, 2
      %s29 = sadd.s32 1, %s24
      %p30 = scmp.ge.s32.totalorder %s29, 1
      %s31 = scalar_select %p30, 0, %s29
      %s32 = sadd.s32 1, %s23
      %s33 = scalar_select %p30, %s32, %s23
      %p34 = scmp.ge.s32.totalorder %s33, 2
      %s35 = scalar_select %p34, 0, %s33
      %s36 = sadd.s32 %s23, %s24
      %s37 = sadd.s32 %s35, %s31
      %s38 = ssub.s32 %s36, %s37
      %p39 = scmp.eq.s32.totalorder %s38, 0
      %s41 = sadd.s32 %s40, 1
      %s42 = scalar_select %p39, %s40, %s41
      %p45 = pneg %p39
      %p46 = scmp.eq.s32.totalorder %s16, 1
      %p47 = por %p45, %p46
      %p48 = scmp.ne.s32.totalorder %s40, %s43
      %p49 = scmp.eq.s32.totalorder %s16, 0
      %p50 = por %p48, %p49
      %p51 = scmp.ne.s32.totalorder %s40, %s43
      %p52 = scmp.eq.s32.totalorder %s21, 1
      %p53 = por %p51, %p52
      %p54 = scmp.ne.s32.totalorder %s43, %s44
      %p55 = scmp.eq.s32.totalorder %s21, 0
      %p56 = por %p54, %p55
      %p57 = scmp.ne.s32.totalorder %s43, %s44
      %p58 = scmp.eq.s32.totalorder %s22, 1
      %p59 = por %p57, %p58
      %p61 = scmp.ne.s32.totalorder %s44, %s60
      %p62 = scmp.eq.s32.totalorder %s22, 0
      %p63 = por %p61, %p62
      %s64 = sadd.s32 %s23, %s24
      %s65 = sadd.s32 %s35, %s31
      %s66 = ssub.s32 %s64, %s65
      %p67 = scmp.eq.s32.totalorder %s66, 0
      %s69 = sadd.s32 %s68, 1
      %s70 = scalar_select %p67, %s68, %s69
      %p73 = pneg %p67
      %p74 = scmp.eq.s32.totalorder %s16, 1
      %p75 = por %p73, %p74
      %p76 = scmp.ne.s32.totalorder %s68, %s71
      %p77 = scmp.eq.s32.totalorder %s16, 0
      %p78 = por %p76, %p77
      %p79 = scmp.ne.s32.totalorder %s68, %s71
      %p80 = scmp.eq.s32.totalorder %s21, 1
      %p81 = por %p79, %p80
      %p82 = scmp.ne.s32.totalorder %s71, %s72
      %p83 = scmp.eq.s32.totalorder %s21, 0
      %p84 = por %p82, %p83
      %p85 = scmp.ne.s32.totalorder %s71, %s72
      %p86 = scmp.eq.s32.totalorder %s22, 1
      %p87 = por %p85, %p86
      %p89 = scmp.ne.s32.totalorder %s72, %s88
      %p90 = scmp.eq.s32.totalorder %s22, 0
      %p91 = por %p89, %p90
      %s92 = ssub.s32 %s23, %s35
      %p93 = scmp.eq.s32.totalorder %s92, 0
      %s95 = sadd.s32 %s94, 1
      %s96 = scalar_select %p93, %s94, %s95
      %p99 = pneg %p93
      %p100 = scmp.eq.s32.totalorder %s16, 1
      %p101 = por %p99, %p100
      %p102 = scmp.ne.s32.totalorder %s94, %s97
      %p103 = scmp.eq.s32.totalorder %s16, 0
      %p104 = por %p102, %p103
      %p105 = scmp.ne.s32.totalorder %s94, %s97
      %p106 = scmp.eq.s32.totalorder %s21, 1
      %p107 = por %p105, %p106
      %p108 = scmp.ne.s32.totalorder %s97, %s98
      %p109 = scmp.eq.s32.totalorder %s21, 0
      %p110 = por %p108, %p109
      %p111 = scmp.ne.s32.totalorder %s97, %s98
      %p112 = scmp.eq.s32.totalorder %s22, 1
      %p113 = por %p111, %p112
      %p115 = scmp.ne.s32.totalorder %s98, %s114
      %p116 = scmp.eq.s32.totalorder %s22, 0
      %p117 = por %p115, %p116
      %s118 = ssub.s32 %s23, %s35
      %p119 = scmp.eq.s32.totalorder %s118, 0
      %s121 = sadd.s32 %s120, 1
      %s122 = scalar_select %p119, %s120, %s121
      %p125 = pneg %p119
      %p126 = scmp.eq.s32.totalorder %s16, 1
      %p127 = por %p125, %p126
      %p128 = scmp.ne.s32.totalorder %s120, %s123
      %p129 = scmp.eq.s32.totalorder %s16, 0
      %p130 = por %p128, %p129
      %p131 = scmp.ne.s32.totalorder %s120, %s123
      %p132 = scmp.eq.s32.totalorder %s21, 1
      %p133 = por %p131, %p132
      %p134 = scmp.ne.s32.totalorder %s123, %s124
      %p135 = scmp.eq.s32.totalorder %s21, 0
      %p136 = por %p134, %p135
      %p137 = scmp.ne.s32.totalorder %s123, %s124
      %p138 = scmp.eq.s32.totalorder %s22, 1
      %p139 = por %p137, %p138
      %p141 = scmp.ne.s32.totalorder %s124, %s140
      %p142 = scmp.eq.s32.totalorder %s22, 0
      %p143 = por %p141, %p142
      %p144 = scmp.le.s32.totalorder 1, %s16
      %p145 = scmp.lt.s32.totalorder %s16, 3
      %p146 = pnand %p144, %p145
      %p147 = pneg %p146
      // Predicated region
      $region9: #{tpu_custom_call.1} parent=5 // pred_check
        _
      $region10: #{tpu_custom_call.1} parent=5 // pred_check_branch
        %149 = sbr.rel (%p146) target = $region12
      $region11: #{tpu_custom_call.1} parent=5 // pred_region
        %s150 = ssub.s32 %s16, 1
      $region12: #{tpu_custom_call.1} parent=5 // pred_fallthru
        _
      %p151 = scmp.lt.s32.totalorder %s16, 2
      // Predicated region
      $region13: #{tpu_custom_call.1} parent=5 // pred_check
        %p152 = pneg %p151
      $region14: #{tpu_custom_call.1} parent=5 // pred_check_branch
        %154 = sbr.rel (%p152) target = $region16
      $region15: #{tpu_custom_call.1} parent=5 // pred_region
        // Predicated region
        $region17: #{tpu_custom_call.1} parent=15 // pred_check
          %p155 = pneg %p50
        $region18: #{tpu_custom_call.1} parent=15 // pred_check_branch
          %157 = sbr.rel (%p155) target = $region20
        $region19: #{tpu_custom_call.1} parent=15 // pred_region
          %s158 = sand.u32 %s40, 1
          %s159 = sand.u32 %s40, 1
          %s160 = smul.addr %s159, 32
          %s161 = scalar_lea.vmem [#allocation2], %s160
          %s162 = sadd.s32 %s23, %s24
          %s163 = smul.addr %s162, 8
          %s164 = scalar_lea.vmem %s0, %s163
          // Predicated region
          $region21: #{tpu_custom_call.1} parent=19 // pred_check
            _
          $region22: #{tpu_custom_call.1} parent=19 // pred_check_branch
            %166 = sbr.rel (0) target = $region24
          $region23: #{tpu_custom_call.1} parent=19 // pred_region
            // Predicated region
            $region25: #{tpu_custom_call.1} parent=23 // pred_check
              _
            $region26: #{tpu_custom_call.1} parent=23 // pred_check_branch
              %168 = sbr.rel (0) target = $region28
            $region27: #{tpu_custom_call.1} parent=23 // pred_region
              // Predicated region
              $region40: #{tpu_custom_call.1} parent=27 // pred_check
                _
              $region41: #{tpu_custom_call.1} parent=27 // pred_check_branch
                %189 = sbr.rel (0) target = $region43
              $region42: #{tpu_custom_call.1} parent=27 // pred_region
                loop: start=0, step=1, limit=1
                $region44: #{tpu_custom_call.1} parent=42 // loop_pre_header
                  _
                $region45: #{tpu_custom_call.1} parent=42 // loop_header
                  %s191 = sphi 0, %s195
                  %p192 = scmp.ge.s32.totalorder %s191, 1
                  %s196 = sphi %s164, %s164
                  %s197 = sphi %s161, %s161
                $region46: #{tpu_custom_call.1} parent=42 // loop_header_branch
                  %194 = sbr.rel (%p192) target = $region50
                $region47: #{tpu_custom_call.1} parent=42 // loop_body
                  %v198 = vld [vmem:[%s196] sm:$0xff]
                  %199 = vst [vmem:[%s197] sm:$0xff] %v198
                  %v200 = vld [vmem:[%s196 + $0x10] sm:$0xff]
                  %201 = vst [vmem:[%s197 + $0x8] sm:$0xff] %v200
                  %v202 = vld [vmem:[%s196 + $0x20] sm:$0xff]
                  %203 = vst [vmem:[%s197 + $0x10] sm:$0xff] %v202
                  %v204 = vld [vmem:[%s196 + $0x30] sm:$0xff]
                  %205 = vst [vmem:[%s197 + $0x18] sm:$0xff] %v204
                $region48: #{tpu_custom_call.1} parent=42 // loop_footer
                  %s195 = sadd.s32 1, %s191
                $region49: #{tpu_custom_call.1} parent=42 // loop_footer_branch
                  %190 = sbr.rel target = $region45
                $region50: #{tpu_custom_call.1} parent=42 // loop_exit
                  _
              $region43: #{tpu_custom_call.1} parent=27 // pred_fallthru
                _
              // Predicated region
              $region51: #{tpu_custom_call.1} parent=27 // pred_check
                _
              $region52: #{tpu_custom_call.1} parent=27 // pred_check_branch
                %207 = sbr.rel target = $region54
              $region53: #{tpu_custom_call.1} parent=27 // pred_region
                _
              $region54: #{tpu_custom_call.1} parent=27 // pred_fallthru
                _
            $region28: #{tpu_custom_call.1} parent=23 // pred_fallthru
              _
            // Predicated region
            $region29: #{tpu_custom_call.1} parent=23 // pred_check
              _
            $region30: #{tpu_custom_call.1} parent=23 // pred_check_branch
              %170 = sbr.rel target = $region32
            $region31: #{tpu_custom_call.1} parent=23 // pred_region
              loop: start=0, step=1, limit=1
              $region33: #{tpu_custom_call.1} parent=31 // loop_pre_header
                _
              $region34: #{tpu_custom_call.1} parent=31 // loop_header
                %s173 = sphi 0, %s177
                %p174 = scmp.ge.s32.totalorder %s173, 1
                %s178 = sphi %s164, %s164
                %s179 = sphi %s161, %s161
              $region35: #{tpu_custom_call.1} parent=31 // loop_header_branch
                %176 = sbr.rel (%p174) target = $region39
              $region36: #{tpu_custom_call.1} parent=31 // loop_body
                %v180 = vld [vmem:[%s178] sm:$0xff]
                %181 = vst [vmem:[%s179] sm:$0xff] %v180
                %v182 = vld [vmem:[%s178 + $0x10] sm:$0xff]
                %183 = vst [vmem:[%s179 + $0x8] sm:$0xff] %v182
                %v184 = vld [vmem:[%s178 + $0x20] sm:$0xff]
                %185 = vst [vmem:[%s179 + $0x10] sm:$0xff] %v184
                %v186 = vld [vmem:[%s178 + $0x30] sm:$0xff]
                %187 = vst [vmem:[%s179 + $0x18] sm:$0xff] %v186
              $region37: #{tpu_custom_call.1} parent=31 // loop_footer
                %s177 = sadd.s32 1, %s173
              $region38: #{tpu_custom_call.1} parent=31 // loop_footer_branch
                %172 = sbr.rel target = $region34
              $region39: #{tpu_custom_call.1} parent=31 // loop_exit
                _
            $region32: #{tpu_custom_call.1} parent=23 // pred_fallthru
              _
          $region24: #{tpu_custom_call.1} parent=19 // pred_fallthru
            _
          %208 = vnop
        $region20: #{tpu_custom_call.1} parent=15 // pred_fallthru
          _
        // Predicated region
        $region55: #{tpu_custom_call.1} parent=15 // pred_check
          %p209 = pneg %p78
        $region56: #{tpu_custom_call.1} parent=15 // pred_check_branch
          %211 = sbr.rel (%p209) target = $region58
        $region57: #{tpu_custom_call.1} parent=15 // pred_region
          %s212 = sadd.s32 %s23, %s24
          %p213 = scmp.lt.s32.totalorder %s212, 1
          %s214 = scalar_select %p213, %s212, 1
          %s215 = scalar_lea.vmem %s1, %s214
          %s216 = sadd.s32 %s23, %s24
        $region58: #{tpu_custom_call.1} parent=15 // pred_fallthru
          _
      $region16: #{tpu_custom_call.1} parent=5 // pred_fallthru
        _
      %p217 = scmp.le.s32.totalorder 1, %s16
      %p218 = scmp.lt.s32.totalorder %s16, 3
      %p219 = pnand %p217, %p218
      %p220 = pneg %p219
      // Predicated region
      $region59: #{tpu_custom_call.1} parent=5 // pred_check
        _
      $region60: #{tpu_custom_call.1} parent=5 // pred_check_branch
        %222 = sbr.rel (%p219) target = $region62
      $region61: #{tpu_custom_call.1} parent=5 // pred_region
        %s223 = ssub.s32 %s16, 1
        %s224 = sand.u32 %s43, 1
        %s225 = sand.u32 %s43, 1
        %s226 = smul.addr %s225, 32
        %s227 = scalar_lea.vmem [#allocation2], %s226
        // Predicated region
        $region63: #{tpu_custom_call.1} parent=61 // pred_check
          %p228 = pneg %p56
        $region64: #{tpu_custom_call.1} parent=61 // pred_check_branch
          %230 = sbr.rel (%p228) target = $region66
        $region65: #{tpu_custom_call.1} parent=61 // pred_region
          _
        $region66: #{tpu_custom_call.1} parent=61 // pred_fallthru
          _
        %s231 = sand.u32 %s43, 1
        %s232 = sand.u32 %s43, 1
        %s233 = smul.addr %s232, 32
        %s234 = scalar_lea.vmem [#allocation2], %s233
        %p235 = pneg %p56
        %p236 = pneg %p53
        %s237 = sadd.s32 %s25, %s26
        %p238 = scmp.lt.s32.totalorder %s237, 1
        %s239 = scalar_select %p238, %s237, 1
        %s240 = scalar_lea.vmem %s1, %s239
        %p241 = pneg %p84
        %p242 = pneg %p81
        %p243 = pneg %p110
        %p244 = pneg %p107
        %s245 = sand.u32 %s97, 1
        %s246 = scalar_lea.sflag [#allocation4], %s245
        %s247 = sand.u32 %s97, 1
        %s248 = smul.addr %s247, 2
        %s249 = scalar_lea.vmem [#allocation3], %s248
        %p250 = pneg %p136
        %p251 = pneg %p133
        %s252 = sand.u32 %s123, 1
        %s253 = scalar_lea.sflag [#allocation6], %s252
        %s254 = sand.u32 %s123, 1
        %s255 = smul.addr %s254, 2
        %s256 = scalar_lea.vmem [#allocation5], %s255
        %s257 = sadd.s32 %s25, %s26
        %s258 = sadd.s32 %s25, %s26
        %p259 = scmp.lt.s32.totalorder %s258, 1
        %s260 = scalar_select %p259, %s258, 1
        %s261 = scalar_lea.vmem %s1, %s260
        %s262 = sadd.s32 %s25, %s26
        %p263 = scmp.eq.s32.totalorder %s26, 0
        // Predicated region
        $region67: #{tpu_custom_call.1} parent=61 // pred_check
          %p264 = pneg %p263
        $region68: #{tpu_custom_call.1} parent=61 // pred_check_branch
          %266 = sbr.rel (%p264) target = $region70
        $region69: #{tpu_custom_call.1} parent=61 // pred_region
          %vm267 = vcmask 66560
          %268 = vst.msk [vmem:[%s249] sm:$0x3] %vm267, 0.0
          %269 = vst.msk [vmem:[%s256] sm:$0x3] %vm267, 0.0
        $region70: #{tpu_custom_call.1} parent=61 // pred_fallthru
          _
        %v270 = vld [vmem:[%s227] sm:$0xff]
        %v271 = vld [vmem:[%s227 + $0x8] sm:$0x1]
        %v272 = vld [vmem:[%s227 + $0x10] sm:$0xff]
        %v273 = vld [vmem:[%s227 + $0x18] sm:$0x1]
        %v274 = vld [vmem:[%s261] sm:$0x1]
        %v275 = vunpack.c.0.s8 %v274
        %vm276 = vcmask 1040384
        %v277 = vsel %vm276, %v271, -inf
        %v278 = vmax.f32 %v270, %v277
        %v279 = vrot.slane %v278, 4
        %v280 = vmax.f32 %v278, %v279
        %v281 = vrot.slane %v280, 2
        %v282 = vmax.f32 %v280, %v281
        %v283 = vrot.slane %v282, 1
        %v284 = vmax.f32 %v282, %v283
        %v285 = vsel %vm276, %v273, -inf
        %v286 = vmax.f32 %v272, %v285
        %v287 = vrot.slane %v286, 4
        %v288 = vmax.f32 %v286, %v287
        %v289 = vrot.slane %v288, 2
        %v290 = vmax.f32 %v288, %v289
        %v291 = vrot.slane %v290, 1
        %v292 = vmax.f32 %v290, %v291
        %v293 = vsub.f32 %v270, %v284
        %v294 = vsub.f32 %v271, %v284
        %v295 = vsub.f32 %v272, %v292
        %v296 = vsub.f32 %v273, %v292
        %v297 = vmul.f32 %v293, 1.442695
        %v298 = vpow.pop %v297
        %v299 = vmul.f32 %v294, 1.442695
        %v300 = vpow.pop %v299
        %v301 = vmul.f32 %v295, 1.442695
        %v302 = vpow.pop %v301
        %v303 = vmul.f32 %v296, 1.442695
        %v304 = vpow.pop %v303
        %v305 = vsel %vm276, %v300, 0.0
        %v306 = vadd.f32 %v298, %v305
        %v307 = vrot.slane %v306, 4
        %v308 = vadd.f32 %v306, %v307
        %v309 = vrot.slane %v308, 2
        %v310 = vadd.f32 %v308, %v309
        %v311 = vrot.slane %v310, 1
        %v312 = vadd.f32 %v310, %v311
        %v313 = vsel %vm276, %v304, 0.0
        %v314 = vadd.f32 %v302, %v313
        %v315 = vrot.slane %v314, 4
        %v316 = vadd.f32 %v314, %v315
        %v317 = vrot.slane %v316, 2
        %v318 = vadd.f32 %v316, %v317
        %v319 = vrot.slane %v318, 1
        %v320 = vadd.f32 %v318, %v319
        %v321 = vrcp.pop %v312
        %v322 = vrcp.pop %v320
        %v323 = vmul.f32 %v298, %v321
        %v324 = vmul.f32 %v300, %v321
        %v325 = vmul.f32 %v302, %v322
        %v326 = vmul.f32 %v304, %v322
        %v327 = vlaneseq
        %v328 = vshrl.u32 %v327, 7
        %v329 = vadd.s32 %v328, 8
        %v331 = vunpack.c.l.s4 1966171168
        %v332 = vunpack.c.0.s8 %v331
        %v333 = vlaneseq
        %v334 = vshrl.u32 %v333, 7
        %v335 = vsub.s32 %v332, %v334
        %v336 = vrot.slane %v275, %v335
        %v337 = vcombine.high %v336, %v336
        %v339 = vunpack.c.l.s4 1966171168
        %v340 = vunpack.c.0.s8 %v339
        %v341 = vlaneseq
        %v342 = vshrl.u32 %v341, 7
        %v343 = vsub.s32 %v340, %v342
        %v344 = vrot.slane %v336, %v343
        %v346 = vunpack.c.l.s4 1966171168
        %v347 = vunpack.c.0.s8 %v346
        %v348 = vlaneseq
        %v349 = vshrl.u32 %v348, 7
        %v350 = vsub.s32 %v347, %v349
        %v351 = vrot.slane %v337, %v350
        %v352 = vlaneseq
        %v353 = vshrl.u32 %v352, 7
        %v354 = vsub.s32 0, %v353
        %v355 = vrot.slane %v344, %v354
        %v356 = vlaneseq
        %v357 = vshrl.u32 %v356, 7
        %v358 = vsub.s32 0, %v357
        %v359 = vrot.slane %v351, %v358
        %vm360 = vcmp.eq.s32.totalorder %v355, %v328
        %vm361 = vcmp.eq.s32.totalorder %v355, %v329
        %vm362 = vcmp.eq.s32.totalorder %v359, %v328
        %vm363 = vcmp.eq.s32.totalorder %v359, %v329
        %v364 = vsel %vm360, 1, 0
        %v365 = vsel %vm361, 1, 0
        %v366 = vsel %vm362, 1, 0
        %v367 = vsel %vm363, 1, 0
        %v368 = vcvt.s32.f32 %v364
        %v369 = vcvt.s32.f32 %v365
        %v370 = vcvt.s32.f32 %v366
        %v371 = vcvt.s32.f32 %v367
        %v372 = vmul.f32 %v323, %v323
        %v373 = vmul.f32 %v324, %v324
        %v374 = vmul.f32 %v325, %v325
        %v375 = vmul.f32 %v326, %v326
        %v376 = vmul.f32 %v323, %v368
        %v377 = vmul.f32 %v324, %v369
        %v378 = vmul.f32 %v325, %v370
        %v379 = vmul.f32 %v326, %v371
        %380 = vadd.xlane.f32.xlu0 %v376
        %v381 = vpop.xlane.xlu0 %380
        %v382 = vsel %vm276, %v377, 0.0
        %383 = vadd.xlane.f32.xlu0 %v382
        %v384 = vpop.xlane.xlu0 %383
        %385 = vadd.xlane.f32.xlu0 %v378
        %v386 = vpop.xlane.xlu0 %385
        %v387 = vsel %vm276, %v379, 0.0
        %388 = vadd.xlane.f32.xlu0 %v387
        %v389 = vpop.xlane.xlu0 %388
        %v390 = vadd.f32 %v372, %v368
        %v391 = vadd.f32 %v373, %v369
        %v392 = vadd.f32 %v374, %v370
        %v393 = vadd.f32 %v375, %v371
        %394 = vadd.xlane.f32.xlu0 %v390
        %v395 = vpop.xlane.xlu0 %394
        %v396 = vsel %vm276, %v391, 0.0
        %397 = vadd.xlane.f32.xlu0 %v396
        %v398 = vpop.xlane.xlu0 %397
        %399 = vadd.xlane.f32.xlu0 %v392
        %v400 = vpop.xlane.xlu0 %399
        %v401 = vsel %vm276, %v393, 0.0
        %402 = vadd.xlane.f32.xlu0 %v401
        %v403 = vpop.xlane.xlu0 %402
        %v404 = vld [vmem:[%s249] sm:$0x3]
        %v409 = vlaneseq
        %v410 = vand.u32 %v409, 127
        %v411 = vlaneseq
        %v412 = vshrl.u32 %v411, 7
        %v413 = vsub.s32 %v410, %v412
        %v414 = vrot.slane %v381, %v413
        %v415 = vadd.s32 %v410, 4294967288
        %v416 = vlaneseq
        %v417 = vshrl.u32 %v416, 7
        %v418 = vsub.s32 %v415, %v417
        %v419 = vrot.slane %v384, %v418
        %vm420 = vcmask 130112
        %v421 = vsel %vm420, %v419, %v414
        %v422 = vlaneseq
        %v423 = vshrl.u32 %v422, 7
        %v424 = vsub.s32 %v410, %v423
        %v425 = vrot.slane %v386, %v424
        %v426 = vlaneseq
        %v427 = vshrl.u32 %v426, 7
        %v428 = vsub.s32 %v415, %v427
        %v429 = vrot.slane %v389, %v428
        %v430 = vsel %vm420, %v429, %v425
        %vm431 = vcmask 1041409
        %v432 = vsel %vm431, %v430, %v421
        %v434 = vadd.f32 %v404, %v432
        %vm435 = vcmask 66560
        %436 = vst.msk [vmem:[%s249] sm:$0x3] %vm435, %v434
        %v437 = vld [vmem:[%s256] sm:$0x3]
        %v442 = vlaneseq
        %v443 = vshrl.u32 %v442, 7
        %v444 = vsub.s32 %v410, %v443
        %v445 = vrot.slane %v395, %v444
        %v446 = vlaneseq
        %v447 = vshrl.u32 %v446, 7
        %v448 = vsub.s32 %v415, %v447
        %v449 = vrot.slane %v398, %v448
        %v450 = vsel %vm420, %v449, %v445
        %v451 = vlaneseq
        %v452 = vshrl.u32 %v451, 7
        %v453 = vsub.s32 %v410, %v452
        %v454 = vrot.slane %v400, %v453
        %v455 = vlaneseq
        %v456 = vshrl.u32 %v455, 7
        %v457 = vsub.s32 %v415, %v456
        %v458 = vrot.slane %v403, %v457
        %v459 = vsel %vm420, %v458, %v454
        %v460 = vsel %vm431, %v459, %v450
        %v462 = vadd.f32 %v437, %v460
        %463 = vst.msk [vmem:[%s256] sm:$0x3] %vm435, %v462
        %s464 = sand.u32 %s97, 1
        %s465 = scalar_lea.sflag [#allocation4], %s464
        %s466 = sand.u32 %s97, 1
        %s467 = smul.addr %s466, 2
        %s468 = scalar_lea.vmem [#allocation3], %s467
        %s469 = sand.u32 %s123, 1
        %s470 = scalar_lea.sflag [#allocation6], %s469
        %s471 = sand.u32 %s123, 1
        %s472 = smul.addr %s471, 2
        %s473 = scalar_lea.vmem [#allocation5], %s472
        // Predicated region
        $region71: #{tpu_custom_call.1} parent=61 // pred_check
          %p474 = pneg %p107
        $region72: #{tpu_custom_call.1} parent=61 // pred_check_branch
          %476 = sbr.rel (%p474) target = $region74
        $region73: #{tpu_custom_call.1} parent=61 // pred_region
          %s478 = ssub.s32 32, 32
          %479 = vsyncadd %s465, %s478
          %s480 = smul.addr %s25, 32
          %s481 = scalar_lea.hbm %s2, %s480
          %s483 = sshll.u32 %s468, 4
          %s484 = int_to_ptr.vmem [resolvable:$true] %s483
          %486 = dma.vmem_to_hbm [thread:$0]  %s484, 32, %s481, %s465
        $region74: #{tpu_custom_call.1} parent=61 // pred_fallthru
          _
        // Predicated region
        $region75: #{tpu_custom_call.1} parent=61 // pred_check
          %p487 = pneg %p133
        $region76: #{tpu_custom_call.1} parent=61 // pred_check_branch
          %489 = sbr.rel (%p487) target = $region78
        $region77: #{tpu_custom_call.1} parent=61 // pred_region
          %s491 = ssub.s32 32, 32
          %492 = vsyncadd %s470, %s491
          %s493 = smul.addr %s25, 32
          %s494 = scalar_lea.hbm %s3, %s493
          %s496 = sshll.u32 %s473, 4
          %s497 = int_to_ptr.vmem [resolvable:$true] %s496
          %499 = dma.vmem_to_hbm [thread:$0]  %s497, 32, %s494, %s470
        $region78: #{tpu_custom_call.1} parent=61 // pred_fallthru
          _
      $region62: #{tpu_custom_call.1} parent=5 // pred_fallthru
        _
      %p500 = scmp.le.s32.totalorder 2, %s16
      // Predicated region
      $region79: #{tpu_custom_call.1} parent=5 // pred_check
        %p501 = pneg %p500
      $region80: #{tpu_custom_call.1} parent=5 // pred_check_branch
        %503 = sbr.rel (%p501) target = $region82
      $region81: #{tpu_custom_call.1} parent=5 // pred_region
        %s504 = ssub.s32 %s16, 2
        // Predicated region
        $region83: #{tpu_custom_call.1} parent=81 // pred_check
          %p505 = pneg %p113
        $region84: #{tpu_custom_call.1} parent=81 // pred_check_branch
          %507 = sbr.rel (%p505) target = $region86
        $region85: #{tpu_custom_call.1} parent=81 // pred_region
          %s508 = sand.u32 %s98, 1
          %s509 = scalar_lea.sflag [#allocation4], %s508
          %s510 = sand.u32 %s98, 1
          %s511 = smul.addr %s510, 2
          %s512 = scalar_lea.vmem [#allocation3], %s511
          %513 = dma.done %s509, 32
        $region86: #{tpu_custom_call.1} parent=81 // pred_fallthru
          _
        // Predicated region
        $region87: #{tpu_custom_call.1} parent=81 // pred_check
          %p514 = pneg %p139
        $region88: #{tpu_custom_call.1} parent=81 // pred_check_branch
          %516 = sbr.rel (%p514) target = $region90
        $region89: #{tpu_custom_call.1} parent=81 // pred_region
          %s517 = sand.u32 %s124, 1
          %s518 = scalar_lea.sflag [#allocation6], %s517
          %s519 = sand.u32 %s124, 1
          %s520 = smul.addr %s519, 2
          %s521 = scalar_lea.vmem [#allocation5], %s520
          %522 = dma.done %s518, 32
        $region90: #{tpu_custom_call.1} parent=81 // pred_fallthru
          _
      $region82: #{tpu_custom_call.1} parent=5 // pred_fallthru
        _
    $region6: #{tpu_custom_call.1} parent=1 // loop_footer
      %s20 = sadd.s32 1, %s16
    $region7: #{tpu_custom_call.1} parent=1 // loop_footer_branch
      %15 = sbr.rel target = $region3
    $region8: #{tpu_custom_call.1} parent=1 // loop_exit
      _
    %523 = vsyncpa [#allocation4], 1
    %s524 = scalar_lea.sflag [#allocation4], 1
    %525 = vsyncpa %s524, 1
    %526 = vsyncpa [#allocation6], 1
    %s527 = scalar_lea.sflag [#allocation6], 1
    %528 = vsyncpa %s527, 1

</llo_original>
